<compile_context>
chip_gen: v6e
topology: v6e:2x2x1
jax: 0.10.0
libtpu: 0.0.40
codegen_flags: <defaults>
</compile_context>

<pallas_src>
import jax
import jax.numpy as jnp
from jax.experimental import pallas as pl
from jax.experimental.pallas import tpu as pltpu


def _hswish_kernel(x_ref, o_ref):
    x = x_ref[...]
    # x * relu6(x + 3) * (1/6), computed in the input dtype (weak-typed scalars).
    relu6 = jnp.clip(x + 3.0, 0.0, 6.0)
    o_ref[...] = x * relu6 * (1.0 / 6.0)


# Sublane packing per element size: f32 -> 8, bf16/f16 -> 16, int8/fp8 -> 32.
_SUBLANE = {4: 8, 2: 16, 1: 32}


def _largest_lane_divisor(total: int, max_cols: int) -> int:
    """Largest divisor of `total` that is a multiple of 128 and <= max_cols (0 if none)."""
    best = 0
    i = 1
    while i * i <= total:
        if total % i == 0:
            for d in (i, total // i):
                if d % 128 == 0 and d <= max_cols and d > best:
                    best = d
        i += 1
    return best


def hswish(x: jax.Array, *, target_block_bytes: int = 4 * 1024 * 1024) -> jax.Array:
    """Elementwise h-swish. Accepts any shape (e.g. NCHW); same shape/dtype out."""
    orig_shape = x.shape
    dtype = x.dtype
    total = int(x.size)
    if total == 0:
        return x

    itemsize = jnp.dtype(dtype).itemsize
    sub = _SUBLANE.get(itemsize, 8)

    compiler_params = pltpu.CompilerParams(
        dimension_semantics=("parallel",),
        vmem_limit_bytes=32 * 1024 * 1024,
    )
    cost = pl.CostEstimate(
        flops=5 * total,
        transcendentals=0,
        bytes_accessed=2 * total * itemsize,
    )

    # Widest lane dim such that a (sub, cols) block still fits the block budget.
    max_cols = max(128, (target_block_bytes // (sub * itemsize)) // 128 * 128)
    cols = _largest_lane_divisor(total, max_cols) if total % 128 == 0 else 0

    if cols:
        # ---- Path A: lane-dense 2-D view, tile along rows. -------------------
        rows = total // cols
        x2 = x.reshape(rows, cols)  # contiguous reshape: no data movement

        if rows <= sub:
            tile_rows = rows  # tiny: one block; full dim waives the sublane rule
        else:
            # Budget-limited rows per block, rounded to the sublane packing.
            budget_rows = max(sub, (target_block_bytes // (cols * itemsize)) // sub * sub)
            # Ensure >= 2 grid steps so both v7x TensorCores get work.
            half = (rows + 1) // 2
            half = ((half + sub - 1) // sub) * sub
            tile_rows = min(budget_rows, half)

        grid = (pl.cdiv(rows, tile_rows),)
        out = pl.pallas_call(
            _hswish_kernel,
            out_shape=jax.ShapeDtypeStruct((rows, cols), dtype),
            grid=grid,
            in_specs=[pl.BlockSpec((tile_rows, cols), lambda i: (i, 0))],
            out_specs=pl.BlockSpec((tile_rows, cols), lambda i: (i, 0)),
            compiler_params=compiler_params,
            cost_estimate=cost,
        )(x2)
    else:
        # ---- Path B: no multiple-of-128 divisor -> 1-D lane tiling. ----------
        x1 = x.reshape(total)
        budget_elems = max(1024, (target_block_bytes // itemsize) // 1024 * 1024)
        if total <= 1024:
            block = total  # full dim: legal, single masked-store block
        else:
            half = (total + 1) // 2
            half = ((half + 1023) // 1024) * 1024
            block = min(budget_elems, half)  # multiple of 1024; last block masked

        grid = (pl.cdiv(total, block),)
        out = pl.pallas_call(
            _hswish_kernel,
            out_shape=jax.ShapeDtypeStruct((total,), dtype),
            grid=grid,
            in_specs=[pl.BlockSpec((block,), lambda i: (i,))],
            out_specs=pl.BlockSpec((block,), lambda i: (i,)),
            compiler_params=compiler_params,
            cost_estimate=cost,
        )(x1)

    return out.reshape(orig_shape)


def hswish_ref(x):
    return x * jnp.clip(x + 3.0, 0.0, 6.0) / 6.0


if __name__ == "__main__":
    # NCHW input, matching PyTorch conv-style inputs (batch=2, channels=4, 16x16).
    x = jax.random.normal(jax.random.PRNGKey(0), (2, 4, 16, 16), dtype=jnp.float32) * 4.0
    y = hswish(x)
    jax.block_until_ready(y)
    assert y.shape == x.shape and y.dtype == x.dtype
    assert jnp.allclose(y, hswish_ref(x), atol=1e-6, rtol=1e-6)

    # Odd shape exercising the 1-D (no 128-divisor) fallback path (still zero-copy).
    x2 = jax.random.normal(jax.random.PRNGKey(1), (3, 5, 7), dtype=jnp.float32) * 4.0
    y2 = hswish(x2)
    jax.block_until_ready(y2)
    assert y2.shape == x2.shape and y2.dtype == x2.dtype
    assert jnp.allclose(y2, hswish_ref(x2), atol=1e-6, rtol=1e-6)

    # Mid-sized lane-dense shape: exercises multi-step grid (>= 2 blocks for v7x).
    x3 = jax.random.normal(jax.random.PRNGKey(2), (8, 32, 32, 32), dtype=jnp.bfloat16) * 4.0
    y3 = hswish(x3)
    jax.block_until_ready(y3)
    assert y3.shape == x3.shape and y3.dtype == x3.dtype
    assert jnp.allclose(y3.astype(jnp.float32), hswish_ref(x3.astype(jnp.float32)),
                        atol=5e-2, rtol=5e-2)

    print("KERNEL_OK")
</pallas_src>

<mosaic_0001>
module attributes {stable_mosaic.version = 11 : i64} {
  func.func @_hswish_kernel(%arg0: i32, %arg1: memref<1x2048xf32, #tpu.memory_space<vmem>>, %arg2: memref<1x2048xf32, #tpu.memory_space<vmem>>) attributes {dimension_semantics = [#tpu.dimension_semantics<parallel>], iteration_bounds = array<i64: 1>, scalar_prefetch = 0 : i64, scratch_operands = 0 : i64, tpu.core_type = #tpu.core_type<tc>, window_params = [{transform_indices = @transform_0, window_bounds = array<i64: 1, 2048>}, {transform_indices = @transform_1, window_bounds = array<i64: 1, 2048>}]} {
    %c0 = arith.constant 0 : index
    %c0_0 = arith.constant 0 : index
    %0 = vector.load %arg1[%c0, %c0_0] : memref<1x2048xf32, #tpu.memory_space<vmem>>, vector<1x2048xf32>
    %cst = arith.constant 3.000000e+00 : f32
    %1 = vector.broadcast %cst : f32 to vector<1x2048xf32>
    %2 = arith.addf %0, %1 : vector<1x2048xf32>
    %cst_1 = arith.constant 0.000000e+00 : f32
    %cst_2 = arith.constant 6.000000e+00 : f32
    %3 = vector.broadcast %cst_1 : f32 to vector<1x2048xf32>
    %4 = arith.maximumf %3, %2 : vector<1x2048xf32>
    %5 = vector.broadcast %cst_2 : f32 to vector<1x2048xf32>
    %6 = arith.minimumf %5, %4 : vector<1x2048xf32>
    %7 = arith.mulf %0, %6 : vector<1x2048xf32>
    %cst_3 = arith.constant 0.166666672 : f32
    %8 = vector.broadcast %cst_3 : f32 to vector<1x2048xf32>
    %9 = arith.mulf %7, %8 : vector<1x2048xf32>
    %c0_4 = arith.constant 0 : index
    %c0_5 = arith.constant 0 : index
    %10 = vector.load %arg2[%c0_4, %c0_5] : memref<1x2048xf32, #tpu.memory_space<vmem>>, vector<1x2048xf32>
    tpu.vector_store %arg2[%c0_4, %c0_5], %9 {strides = array<i32>} : memref<1x2048xf32, #tpu.memory_space<vmem>>, vector<1x2048xf32>,
    return
  }
  func.func @transform_0(%arg0: i32) -> (i32, i32) {
    %c0_i32 = arith.constant 0 : i32
    %c0_i32_0 = arith.constant 0 : i32
    return %arg0, %c0_i32 : i32, i32
  }
  func.func @transform_1(%arg0: i32) -> (i32, i32) {
    %c0_i32 = arith.constant 0 : i32
    %c0_i32_0 = arith.constant 0 : i32
    return %arg0, %c0_i32 : i32, i32
  }
}

</mosaic_0001>

<llo_original>
// kernel: tpu_custom_call.1
$region0: #{tpu_custom_call.1}
  #allocation0 [shape = 'u32[]', space=smem, size = 0x4, offset = 0x4, fixed_abs, tag = 'smem constant byte address 0x4 - core index']
  #allocation1 [shape = 'u32[144,128]{1,0:T(1,128)}', space=vmem, size = 0x12000, scoped, tag = 'internal scratch']
  %s0 = inlined_call_operand.hbm [shape: f32[1,2048], index: 0, kind: input, shape index: {}]
  %s1 = inlined_call_operand.hbm [shape: f32[1,2048], index: 1, kind: output, shape index: {}]
  %s2 = sld [smem:[#allocation0]]
  $region18: #{tpu_custom_call.1} parent=0
    _
  %s4 = ssub.s32 1, %s2
  %s5 = scalar_select 0, %s4, %s2
  $region1: #{tpu_custom_call.1} parent=0
    #allocation2 [shape = 'u8[8192]{0}', space=vmem, size = 0x2000, scoped, tag = 'input window, operand 0, single buffered']
    #allocation3 [shape = 's32[1]{0}', space=sflag, size = 0x4, scoped, tag = 'scoped memory for tpu_custom_call.1']
    #allocation4 [shape = 's32[1]{0}', space=sflag, size = 0x4, scoped, tag = 'scoped memory for tpu_custom_call.1']
    #allocation5 [shape = 'u8[8192]{0}', space=vmem, size = 0x2000, scoped, tag = 'output window, operand 0, single buffered']
    %6 = vsyncpa [#allocation3], 0
    %7 = vsyncpa [#allocation4], 0
    // Predicated region
    $region2: #{tpu_custom_call.1} parent=1 // pred_check
      _
    $region3: #{tpu_custom_call.1} parent=1 // pred_check_branch
      %9 = sbr.rel (0) target = $region5
    $region4: #{tpu_custom_call.1} parent=1 // pred_region
      %s11 = ssub.s32 256, 256
      %12 = vsyncadd [#allocation3], %s11
      %s14 = sshll.u32 [#allocation2], 4
      %s15 = int_to_ptr.vmem [resolvable:$true] %s14
      %17 = dma.hbm_to_vmem [thread:$0]  %s0, 256, %s15, [#allocation3]
    $region5: #{tpu_custom_call.1} parent=1 // pred_fallthru
      _
    // Predicated region
    $region6: #{tpu_custom_call.1} parent=1 // pred_check
      _
    $region7: #{tpu_custom_call.1} parent=1 // pred_check_branch
      %19 = sbr.rel (0) target = $region9
    $region8: #{tpu_custom_call.1} parent=1 // pred_region
      %20 = dma.done [#allocation3], 256
    $region9: #{tpu_custom_call.1} parent=1 // pred_fallthru
      _
    %v21 = vld [vmem:[#allocation2] sm:$0xff]
    %v22 = vld [vmem:[#allocation2 + $0x8] sm:$0xff]
    %v23 = vadd.f32 %v21, 3.0
    %v24 = vadd.f32 %v22, 3.0
    %v25 = vmax.f32 %v23, 0.0
    %v26 = vmax.f32 %v24, 0.0
    %v27 = vmin.f32 %v25, 6.0
    %v28 = vmin.f32 %v26, 6.0
    %v29 = vmul.f32 %v21, %v27
    %v30 = vmul.f32 %v22, %v28
    %v31 = vmul.f32 %v29, 0.16666667
    %v32 = vmul.f32 %v30, 0.16666667
    %33 = vst [vmem:[#allocation5] sm:$0xff] %v31
    %34 = vst [vmem:[#allocation5 + $0x8] sm:$0xff] %v32
    // Predicated region
    $region10: #{tpu_custom_call.1} parent=1 // pred_check
      _
    $region11: #{tpu_custom_call.1} parent=1 // pred_check_branch
      %36 = sbr.rel (0) target = $region13
    $region12: #{tpu_custom_call.1} parent=1 // pred_region
      %s38 = ssub.s32 256, 256
      %39 = vsyncadd [#allocation4], %s38
      %s41 = sshll.u32 [#allocation5], 4
      %s42 = int_to_ptr.vmem [resolvable:$true] %s41
      %44 = dma.vmem_to_hbm [thread:$0]  %s42, 256, %s1, [#allocation4]
    $region13: #{tpu_custom_call.1} parent=1 // pred_fallthru
      _
    // Predicated region
    $region14: #{tpu_custom_call.1} parent=1 // pred_check
      _
    $region15: #{tpu_custom_call.1} parent=1 // pred_check_branch
      %46 = sbr.rel (0) target = $region17
    $region16: #{tpu_custom_call.1} parent=1 // pred_region
      %47 = dma.done [#allocation4], 256
    $region17: #{tpu_custom_call.1} parent=1 // pred_fallthru
      _
    %48 = vsyncpa [#allocation3], 1
    %49 = vsyncpa [#allocation4], 1

</llo_original>
